<compile_context>
chip_gen: v7x
topology: tpu7x:2x2x1
jax: 0.10.0
libtpu: 0.0.40
codegen_flags: <defaults>
</compile_context>

<pallas_src>
import jax
import jax.numpy as jnp
from jax.experimental import pallas as pl
from jax.experimental.pallas import tpu as pltpu

LANES = 128   # every GEMM N dim padded to one full lane width
K1 = 128      # padded conv1 im2col depth (81 real = 9 conv2-taps * 9 patch elems)


# ------------------------------ Pallas kernel ------------------------------ #

def _convnet_kernel(p_ref, w1_ref, b1_ref, w2_ref, b2_ref,
                    fw1_ref, fb1_ref, fw2_ref, fb2_ref, o_ref):
    """Fused conv1 -> conv2 -> fc1 -> fc2; all operands VMEM-resident.

    Four MXU dots total.  Padded lanes stay exactly zero end-to-end.
    """
    f32, bf16 = jnp.float32, jnp.bfloat16
    bp = o_ref.shape[0]                       # padded batch (multiple of 8)

    # conv1 + pool(k=1,s=2): one f32 GEMM.  Rows are ordered (spatial, batch);
    # the block-diagonal w1 packing makes the output columns (tap t, cin c),
    # i.e. exactly conv2's im2col LHS -- no gather / reshape needed.
    z1 = jnp.dot(p_ref[...], w1_ref[...], preferred_element_type=f32)
    a1 = jnp.maximum(z1 + b1_ref[...], 0.0).astype(bf16)        # (4*bp, 288)

    # conv2 + pool(k=1,s=2): ONE big-K GEMM (K = 288).
    z2 = jnp.dot(a1, w2_ref[...], preferred_element_type=f32)
    a2 = jnp.maximum(z2 + b2_ref[...], 0.0)                     # (4*bp, 128) f32

    # fc1: PyTorch's view(-1, 256) NCHW flatten == take the 4 contiguous
    # spatial row-slices (rows are (spatial, batch), slice boundaries are
    # vreg-aligned) and concat along lanes -> (bp, 512); then ONE GEMM
    # against the (512, 128) packed fc1 weight.  Single bf16 cast after concat.
    lhs = jnp.concatenate([a2[s * bp:(s + 1) * bp, :] for s in range(4)],
                          axis=-1)                              # (bp, 512)
    h1 = jnp.maximum(
        jnp.dot(lhs.astype(bf16), fw1_ref[...], preferred_element_type=f32)
        + fb1_ref[...], 0.0)                                    # (bp, 128)

    # fc2 (lane- and sublane-dense store; real logits are cols 0..9).
    o_ref[...] = jnp.dot(h1.astype(bf16), fw2_ref[...],
                         preferred_element_type=f32) + fb2_ref[...]


# --------------------------- one-time param repack -------------------------- #

def prepare_params(p, *, hidden):
    """Out-of-hot-path repack: block-diagonal conv1 weight, big-K bf16 slabs
    for conv2/fc1/fc2, all N dims padded to 128 lanes, NCHW flatten folded
    into the fc1 packing."""
    f32, bf16 = jnp.float32, jnp.bfloat16

    # conv1: block-diagonal (K1, 9*32).  OIHW (32,1,3,3) -> (k=9, cout=32).
    w1_flat = jnp.transpose(p["w1"], (2, 3, 1, 0)).reshape(9, 32)
    w1_big = jnp.zeros((K1, 9 * 32), f32)
    for t in range(9):
        w1_big = w1_big.at[t * 9:(t + 1) * 9, t * 32:(t + 1) * 32].set(w1_flat)
    b1_big = jnp.tile(p["b1"][None, :], (1, 9)).astype(f32)      # (1, 288)

    # conv2: single big-K slab (9*32, 128); tap t = 3i+j rows, cols 64.. zero.
    w2_p = jnp.zeros((9 * 32, LANES), f32)
    for i in range(3):
        for j in range(3):
            t = 3 * i + j
            w2_p = w2_p.at[t * 32:(t + 1) * 32, :64].set(p["w2"][:, :, i, j].T)
    b2_p = jnp.zeros((1, LANES), f32).at[0, :64].set(p["b2"])

    # fc1: single big-K slab (4*128, 128).  Row block s holds the weights of
    # PyTorch flatten indices c*4 + s (s = h*2 + w) -> no activation transpose.
    fw1_p = jnp.zeros((4 * LANES, LANES), f32)
    for s in range(4):
        fw1_p = fw1_p.at[s * LANES:s * LANES + 64, :hidden].set(p["fw1"][s::4, :])
    fb1_p = jnp.zeros((1, LANES), f32).at[0, :hidden].set(p["fb1"])

    fw2_p = jnp.zeros((LANES, LANES), f32).at[:hidden, :10].set(p["fw2"])
    fb2_p = jnp.zeros((1, LANES), f32).at[0, :10].set(p["fb2"])

    return dict(w1=w1_big, b1=b1_big,
                w2=w2_p.astype(bf16), b2=b2_p,
                fw1=fw1_p.astype(bf16), fb1=fb1_p,
                fw2=fw2_p.astype(bf16), fb2=fb2_p)


# -------------------------------- forward ---------------------------------- #

def _build_patches(x, b_pad):
    """(B,1,14,14) -> (4*b_pad, K1) f32 conv1 im2col, built ONLY at the
    stride-2 (pool k=1, s=2) positions, rows ordered (spatial s = OH*2+OW,
    batch), cols ordered (conv2 tap t = 3i+j, patch elem k = 3di+dj).
    This hoists the conv2 row-gather entirely into the wrapper."""
    B = x.shape[0]
    x2 = x[:, 0, :, :]
    xp = jnp.zeros((b_pad,) + x2.shape[1:], x2.dtype).at[:B].set(x2)
    cols = []
    for i in range(3):
        for j in range(3):
            for di in range(3):
                for dj in range(3):
                    r0, c0 = 2 * i + di, 2 * j + dj
                    v = xp[:, r0:r0 + 8:4, c0:c0 + 8:4]        # (b_pad, OH, OW)
                    cols.append(jnp.transpose(v, (1, 2, 0)))   # (OH, OW, b_pad)
    pat = jnp.stack(cols, axis=-1).reshape(4 * b_pad, 81)
    return jnp.zeros((4 * b_pad, K1), jnp.float32).at[:, :81].set(pat)


def _full_spec(shape):
    zeros = (0,) * len(shape)
    return pl.BlockSpec(shape, lambda i, _z=zeros: _z)


def convnet_forward(x, prep):
    """x: (B, 1, 14, 14) NCHW float32 -> logits (B, 10) float32."""
    B = x.shape[0]
    b_pad = ((B + 7) // 8) * 8
    patches = _build_patches(x, b_pad)

    operands = (patches, prep["w1"], prep["b1"], prep["w2"], prep["b2"],
                prep["fw1"], prep["fb1"], prep["fw2"], prep["fb2"])
    out_pad = pl.pallas_call(
        _convnet_kernel,
        out_shape=jax.ShapeDtypeStruct((b_pad, LANES), jnp.float32),
        grid=(1,),
        in_specs=[_full_spec(op.shape) for op in operands],
        out_specs=_full_spec((b_pad, LANES)),
        compiler_params=pltpu.CompilerParams(
            dimension_semantics=("arbitrary",)),
        # TODO(synk): at large batch, turn this grid axis into a batch/M tile
        # marked "parallel" (v7x dual-TC sharding + DMA/compute overlap), with
        # weight BlockSpecs using constant index_maps so they stay resident.
    )(*operands)
    return out_pad[:B, :10]


def reference_forward(x, p):
    """Pure-JAX f32 reference with the PyTorch module's semantics."""
    dn = ("NCHW", "OIHW", "NCHW")
    y = jax.lax.conv_general_dilated(x, p["w1"], (1, 1), "VALID", dimension_numbers=dn)
    y = y + p["b1"][None, :, None, None]
    y = jnp.maximum(y[:, :, ::2, ::2], 0.0)            # pool(k=1,s=2) then ReLU
    y = jax.lax.conv_general_dilated(y, p["w2"], (1, 1), "VALID", dimension_numbers=dn)
    y = y + p["b2"][None, :, None, None]
    y = jnp.maximum(y[:, :, ::2, ::2], 0.0)
    y = y.reshape(y.shape[0], -1)                       # NCHW flatten == view(-1, 256)
    y = jnp.maximum(y @ p["fw1"] + p["fb1"], 0.0)
    return y @ p["fw2"] + p["fb2"]


# ---------------------------------- main ------------------------------------ #

if __name__ == "__main__":
    hidden, batch = 32, 2
    key = jax.random.PRNGKey(0)
    ks = jax.random.split(key, 9)

    params = {
        "w1": jax.random.normal(ks[0], (32, 1, 3, 3), jnp.float32) * 0.2,
        "b1": jax.random.normal(ks[1], (32,), jnp.float32) * 0.1,
        "w2": jax.random.normal(ks[2], (64, 32, 3, 3), jnp.float32) * 0.05,
        "b2": jax.random.normal(ks[3], (64,), jnp.float32) * 0.1,
        "fw1": jax.random.normal(ks[4], (256, hidden), jnp.float32) * 0.05,
        "fb1": jax.random.normal(ks[5], (hidden,), jnp.float32) * 0.1,
        "fw2": jax.random.normal(ks[6], (hidden, 10), jnp.float32) * 0.1,
        "fb2": jax.random.normal(ks[7], (10,), jnp.float32) * 0.1,
    }
    x = jax.random.normal(ks[8], (batch, 1, 14, 14), jnp.float32)

    prep = prepare_params(params, hidden=hidden)        # done once, off hot path

    out = jax.block_until_ready(jax.jit(convnet_forward)(x, prep))
    assert out.shape == (batch, 10), out.shape

    ref = jax.block_until_ready(reference_forward(x, params))
    # bf16 GEMM inputs (conv2/fc) with f32 accumulation vs. an f32 reference.
    assert jnp.allclose(out, ref, rtol=2e-2, atol=2e-2), ("mismatch", out, ref)

    print("KERNEL_OK")
</pallas_src>

<mosaic_0001>
module attributes {stable_mosaic.version = 11 : i64} {
  func.func @_convnet_kernel(%arg0: i32, %arg1: memref<32x128xf32, #tpu.memory_space<vmem>>, %arg2: memref<128x288xf32, #tpu.memory_space<vmem>>, %arg3: memref<1x288xf32, #tpu.memory_space<vmem>>, %arg4: memref<288x128xbf16, #tpu.memory_space<vmem>>, %arg5: memref<1x128xf32, #tpu.memory_space<vmem>>, %arg6: memref<512x128xbf16, #tpu.memory_space<vmem>>, %arg7: memref<1x128xf32, #tpu.memory_space<vmem>>, %arg8: memref<128x128xbf16, #tpu.memory_space<vmem>>, %arg9: memref<1x128xf32, #tpu.memory_space<vmem>>, %arg10: memref<8x128xf32, #tpu.memory_space<vmem>>) attributes {dimension_semantics = [#tpu.dimension_semantics<arbitrary>], iteration_bounds = array<i64: 1>, scalar_prefetch = 0 : i64, scratch_operands = 0 : i64, tpu.core_type = #tpu.core_type<tc>, window_params = [{pipeline_mode = #tpu.pipeline_mode<synchronous>, transform_indices = @transform_0, window_bounds = array<i64: 32, 128>}, {pipeline_mode = #tpu.pipeline_mode<synchronous>, transform_indices = @transform_1, window_bounds = array<i64: 128, 288>}, {pipeline_mode = #tpu.pipeline_mode<synchronous>, transform_indices = @transform_2, window_bounds = array<i64: 1, 288>}, {pipeline_mode = #tpu.pipeline_mode<synchronous>, transform_indices = @transform_3, window_bounds = array<i64: 288, 128>}, {pipeline_mode = #tpu.pipeline_mode<synchronous>, transform_indices = @transform_4, window_bounds = array<i64: 1, 128>}, {pipeline_mode = #tpu.pipeline_mode<synchronous>, transform_indices = @transform_5, window_bounds = array<i64: 512, 128>}, {pipeline_mode = #tpu.pipeline_mode<synchronous>, transform_indices = @transform_6, window_bounds = array<i64: 1, 128>}, {pipeline_mode = #tpu.pipeline_mode<synchronous>, transform_indices = @transform_7, window_bounds = array<i64: 128, 128>}, {pipeline_mode = #tpu.pipeline_mode<synchronous>, transform_indices = @transform_8, window_bounds = array<i64: 1, 128>}, {pipeline_mode = #tpu.pipeline_mode<synchronous>, transform_indices = @transform_9, window_bounds = array<i64: 8, 128>}]} {
    %c0 = arith.constant 0 : index
    %c0_0 = arith.constant 0 : index
    %0 = vector.load %arg1[%c0, %c0_0] : memref<32x128xf32, #tpu.memory_space<vmem>>, vector<32x128xf32>
    %c0_1 = arith.constant 0 : index
    %c0_2 = arith.constant 0 : index
    %1 = vector.load %arg2[%c0_1, %c0_2] : memref<128x288xf32, #tpu.memory_space<vmem>>, vector<128x288xf32>
    %cst = arith.constant dense<0.000000e+00> : vector<32x288xf32>
    %2 = tpu.matmul %0, %1, %cst {dimension_numbers = #tpu.dot_dimension_numbers<[1], [0], [0], [1], [0, 0, 1, 1], [], []>} : vector<32x128xf32>, vector<128x288xf32>, vector<32x288xf32> -> vector<32x288xf32>
    %c0_3 = arith.constant 0 : index
    %c0_4 = arith.constant 0 : index
    %3 = vector.load %arg3[%c0_3, %c0_4] : memref<1x288xf32, #tpu.memory_space<vmem>>, vector<1x288xf32>
    %4 = vector.broadcast %3 : vector<1x288xf32> to vector<32x288xf32>
    %5 = arith.addf %2, %4 : vector<32x288xf32>
    %cst_5 = arith.constant 0.000000e+00 : f32
    %6 = vector.broadcast %cst_5 : f32 to vector<32x288xf32>
    %7 = arith.maximumf %5, %6 : vector<32x288xf32>
    %8 = arith.truncf %7 : vector<32x288xf32> to vector<32x288xbf16>
    %c0_6 = arith.constant 0 : index
    %c0_7 = arith.constant 0 : index
    %9 = vector.load %arg4[%c0_6, %c0_7] : memref<288x128xbf16, #tpu.memory_space<vmem>>, vector<288x128xbf16>
    %cst_8 = arith.constant dense<0.000000e+00> : vector<32x128xf32>
    %10 = tpu.matmul %8, %9, %cst_8 {dimension_numbers = #tpu.dot_dimension_numbers<[1], [0], [0], [1], [0, 0, 1, 1], [], []>} : vector<32x288xbf16>, vector<288x128xbf16>, vector<32x128xf32> -> vector<32x128xf32>
    %c0_9 = arith.constant 0 : index
    %c0_10 = arith.constant 0 : index
    %11 = vector.load %arg5[%c0_9, %c0_10] : memref<1x128xf32, #tpu.memory_space<vmem>>, vector<1x128xf32>
    %12 = vector.broadcast %11 : vector<1x128xf32> to vector<32x128xf32>
    %13 = arith.addf %10, %12 : vector<32x128xf32>
    %cst_11 = arith.constant 0.000000e+00 : f32
    %14 = vector.broadcast %cst_11 : f32 to vector<32x128xf32>
    %15 = arith.maximumf %13, %14 : vector<32x128xf32>
    %16 = vector.extract_strided_slice %15 {offsets = [0, 0], sizes = [8, 128], strides = [1, 1]} : vector<32x128xf32> to vector<8x128xf32>
    %17 = vector.extract_strided_slice %15 {offsets = [8, 0], sizes = [8, 128], strides = [1, 1]} : vector<32x128xf32> to vector<8x128xf32>
    %18 = vector.extract_strided_slice %15 {offsets = [16, 0], sizes = [8, 128], strides = [1, 1]} : vector<32x128xf32> to vector<8x128xf32>
    %19 = vector.extract_strided_slice %15 {offsets = [24, 0], sizes = [8, 128], strides = [1, 1]} : vector<32x128xf32> to vector<8x128xf32>
    %20 = tpu.concatenate %16, %17, %18, %19 in 1 : vector<8x128xf32>, vector<8x128xf32>, vector<8x128xf32>, vector<8x128xf32> -> vector<8x512xf32>
    %21 = arith.truncf %20 : vector<8x512xf32> to vector<8x512xbf16>
    %c0_12 = arith.constant 0 : index
    %c0_13 = arith.constant 0 : index
    %22 = vector.load %arg6[%c0_12, %c0_13] : memref<512x128xbf16, #tpu.memory_space<vmem>>, vector<512x128xbf16>
    %cst_14 = arith.constant dense<0.000000e+00> : vector<8x128xf32>
    %23 = tpu.matmul %21, %22, %cst_14 {dimension_numbers = #tpu.dot_dimension_numbers<[1], [0], [0], [1], [0, 0, 1, 1], [], []>} : vector<8x512xbf16>, vector<512x128xbf16>, vector<8x128xf32> -> vector<8x128xf32>
    %c0_15 = arith.constant 0 : index
    %c0_16 = arith.constant 0 : index
    %24 = vector.load %arg7[%c0_15, %c0_16] : memref<1x128xf32, #tpu.memory_space<vmem>>, vector<1x128xf32>
    %25 = vector.broadcast %24 : vector<1x128xf32> to vector<8x128xf32>
    %26 = arith.addf %23, %25 : vector<8x128xf32>
    %cst_17 = arith.constant 0.000000e+00 : f32
    %27 = vector.broadcast %cst_17 : f32 to vector<8x128xf32>
    %28 = arith.maximumf %26, %27 : vector<8x128xf32>
    %29 = arith.truncf %28 : vector<8x128xf32> to vector<8x128xbf16>
    %c0_18 = arith.constant 0 : index
    %c0_19 = arith.constant 0 : index
    %30 = vector.load %arg8[%c0_18, %c0_19] : memref<128x128xbf16, #tpu.memory_space<vmem>>, vector<128x128xbf16>
    %cst_20 = arith.constant dense<0.000000e+00> : vector<8x128xf32>
    %31 = tpu.matmul %29, %30, %cst_20 {dimension_numbers = #tpu.dot_dimension_numbers<[1], [0], [0], [1], [0, 0, 1, 1], [], []>} : vector<8x128xbf16>, vector<128x128xbf16>, vector<8x128xf32> -> vector<8x128xf32>
    %c0_21 = arith.constant 0 : index
    %c0_22 = arith.constant 0 : index
    %32 = vector.load %arg9[%c0_21, %c0_22] : memref<1x128xf32, #tpu.memory_space<vmem>>, vector<1x128xf32>
    %33 = vector.broadcast %32 : vector<1x128xf32> to vector<8x128xf32>
    %34 = arith.addf %31, %33 : vector<8x128xf32>
    %c0_23 = arith.constant 0 : index
    %c0_24 = arith.constant 0 : index
    %35 = vector.load %arg10[%c0_23, %c0_24] : memref<8x128xf32, #tpu.memory_space<vmem>>, vector<8x128xf32>
    tpu.vector_store %arg10[%c0_23, %c0_24], %34 {strides = array<i32>} : memref<8x128xf32, #tpu.memory_space<vmem>>, vector<8x128xf32>,
    return
  }
  func.func @transform_0(%arg0: i32) -> (i32, i32) {
    %c0_i32 = arith.constant 0 : i32
    %c0_i32_0 = arith.constant 0 : i32
    %c0_i32_1 = arith.constant 0 : i32
    return %c0_i32, %c0_i32_0 : i32, i32
  }
  func.func @transform_1(%arg0: i32) -> (i32, i32) {
    %c0_i32 = arith.constant 0 : i32
    %c0_i32_0 = arith.constant 0 : i32
    %c0_i32_1 = arith.constant 0 : i32
    return %c0_i32, %c0_i32_0 : i32, i32
  }
  func.func @transform_2(%arg0: i32) -> (i32, i32) {
    %c0_i32 = arith.constant 0 : i32
    %c0_i32_0 = arith.constant 0 : i32
    %c0_i32_1 = arith.constant 0 : i32
    return %c0_i32, %c0_i32_0 : i32, i32
  }
  func.func @transform_3(%arg0: i32) -> (i32, i32) {
    %c0_i32 = arith.constant 0 : i32
    %c0_i32_0 = arith.constant 0 : i32
    %c0_i32_1 = arith.constant 0 : i32
    return %c0_i32, %c0_i32_0 : i32, i32
  }
  func.func @transform_4(%arg0: i32) -> (i32, i32) {
    %c0_i32 = arith.constant 0 : i32
    %c0_i32_0 = arith.constant 0 : i32
    %c0_i32_1 = arith.constant 0 : i32
    return %c0_i32, %c0_i32_0 : i32, i32
  }
  func.func @transform_5(%arg0: i32) -> (i32, i32) {
    %c0_i32 = arith.constant 0 : i32
    %c0_i32_0 = arith.constant 0 : i32
    %c0_i32_1 = arith.constant 0 : i32
    return %c0_i32, %c0_i32_0 : i32, i32
  }
  func.func @transform_6(%arg0: i32) -> (i32, i32) {
    %c0_i32 = arith.constant 0 : i32
    %c0_i32_0 = arith.constant 0 : i32
    %c0_i32_1 = arith.constant 0 : i32
    return %c0_i32, %c0_i32_0 : i32, i32
  }
  func.func @transform_7(%arg0: i32) -> (i32, i32) {
    %c0_i32 = arith.constant 0 : i32
    %c0_i32_0 = arith.constant 0 : i32
    %c0_i32_1 = arith.constant 0 : i32
    return %c0_i32, %c0_i32_0 : i32, i32
  }
  func.func @transform_8(%arg0: i32) -> (i32, i32) {
    %c0_i32 = arith.constant 0 : i32
    %c0_i32_0 = arith.constant 0 : i32
    %c0_i32_1 = arith.constant 0 : i32
    return %c0_i32, %c0_i32_0 : i32, i32
  }
  func.func @transform_9(%arg0: i32) -> (i32, i32) {
    %c0_i32 = arith.constant 0 : i32
    %c0_i32_0 = arith.constant 0 : i32
    %c0_i32_1 = arith.constant 0 : i32
    return %c0_i32, %c0_i32_0 : i32, i32
  }
}

</mosaic_0001>

<llo_original>
// kernel: convnet_forward.1
$region0: #{convnet_forward.1}
  #allocation0 [shape = 'u32[]', space=smem, size = 0x4, offset = 0x4, fixed_abs, tag = 'smem constant byte address 0x4 - core index']
  #allocation1 [shape = 'u32[144,128]{1,0:T(1,128)}', space=vmem, size = 0x12000, scoped, tag = 'internal scratch']
  %s0 = inlined_call_operand.vmem [shape: f32[32,128], index: 0, kind: input, shape index: {}]
  %s1 = inlined_call_operand.vmem [shape: f32[128,288], index: 1, kind: input, shape index: {}]
  %s2 = inlined_call_operand.vmem [shape: f32[1,288], index: 2, kind: input, shape index: {}]
  %s3 = inlined_call_operand.vmem [shape: bf16[288,128], index: 3, kind: input, shape index: {}]
  %s4 = inlined_call_operand.vmem [shape: f32[1,128], index: 4, kind: input, shape index: {}]
  %s5 = inlined_call_operand.vmem [shape: bf16[512,128], index: 5, kind: input, shape index: {}]
  %s6 = inlined_call_operand.vmem [shape: f32[1,128], index: 6, kind: input, shape index: {}]
  %s7 = inlined_call_operand.vmem [shape: bf16[128,128], index: 7, kind: input, shape index: {}]
  %s8 = inlined_call_operand.vmem [shape: f32[1,128], index: 8, kind: input, shape index: {}]
  %s9 = inlined_call_operand.vmem [shape: f32[8,128], index: 9, kind: output, shape index: {}]
  %s10 = sld [smem:[#allocation0]]
  $region46: #{convnet_forward.1} parent=0
    _
  %s12 = ssub.s32 1, %s10
  %s13 = scalar_select 0, %s12, %s10
  // Predicated region
  $region2: #{convnet_forward.1} parent=0 // pred_check
    _
  $region3: #{convnet_forward.1} parent=0 // pred_check_branch
    %15 = sbr.rel (0) target = $region5
  $region4: #{convnet_forward.1} parent=0 // pred_region
    _
  $region5: #{convnet_forward.1} parent=0 // pred_fallthru
    _
  // Predicated region
  $region6: #{convnet_forward.1} parent=0 // pred_check
    _
  $region7: #{convnet_forward.1} parent=0 // pred_check_branch
    %17 = sbr.rel (0) target = $region9
  $region8: #{convnet_forward.1} parent=0 // pred_region
    _
  $region9: #{convnet_forward.1} parent=0 // pred_fallthru
    _
  // Predicated region
  $region10: #{convnet_forward.1} parent=0 // pred_check
    _
  $region11: #{convnet_forward.1} parent=0 // pred_check_branch
    %19 = sbr.rel (0) target = $region13
  $region12: #{convnet_forward.1} parent=0 // pred_region
    _
  $region13: #{convnet_forward.1} parent=0 // pred_fallthru
    _
  // Predicated region
  $region14: #{convnet_forward.1} parent=0 // pred_check
    _
  $region15: #{convnet_forward.1} parent=0 // pred_check_branch
    %21 = sbr.rel (0) target = $region17
  $region16: #{convnet_forward.1} parent=0 // pred_region
    _
  $region17: #{convnet_forward.1} parent=0 // pred_fallthru
    _
  // Predicated region
  $region18: #{convnet_forward.1} parent=0 // pred_check
    _
  $region19: #{convnet_forward.1} parent=0 // pred_check_branch
    %23 = sbr.rel (0) target = $region21
  $region20: #{convnet_forward.1} parent=0 // pred_region
    _
  $region21: #{convnet_forward.1} parent=0 // pred_fallthru
    _
  // Predicated region
  $region22: #{convnet_forward.1} parent=0 // pred_check
    _
  $region23: #{convnet_forward.1} parent=0 // pred_check_branch
    %25 = sbr.rel (0) target = $region25
  $region24: #{convnet_forward.1} parent=0 // pred_region
    _
  $region25: #{convnet_forward.1} parent=0 // pred_fallthru
    _
  // Predicated region
  $region26: #{convnet_forward.1} parent=0 // pred_check
    _
  $region27: #{convnet_forward.1} parent=0 // pred_check_branch
    %27 = sbr.rel (0) target = $region29
  $region28: #{convnet_forward.1} parent=0 // pred_region
    _
  $region29: #{convnet_forward.1} parent=0 // pred_fallthru
    _
  // Predicated region
  $region30: #{convnet_forward.1} parent=0 // pred_check
    _
  $region31: #{convnet_forward.1} parent=0 // pred_check_branch
    %29 = sbr.rel (0) target = $region33
  $region32: #{convnet_forward.1} parent=0 // pred_region
    _
  $region33: #{convnet_forward.1} parent=0 // pred_fallthru
    _
  // Predicated region
  $region34: #{convnet_forward.1} parent=0 // pred_check
    _
  $region35: #{convnet_forward.1} parent=0 // pred_check_branch
    %31 = sbr.rel (0) target = $region37
  $region36: #{convnet_forward.1} parent=0 // pred_region
    _
  $region37: #{convnet_forward.1} parent=0 // pred_fallthru
    _
  %v33 = vld [vmem:[%s0] sm:$0xff]
  %v34 = vld [vmem:[%s0 + $0x8] sm:$0xff]
  %v35 = vld [vmem:[%s0 + $0x10] sm:$0xff]
  %v36 = vld [vmem:[%s0 + $0x18] sm:$0xff]
  %v37 = vld [vmem:[%s1] sm:$0xff]
  %v38 = vld [vmem:[%s1 + $0x8] sm:$0xff]
  %v39 = vld [vmem:[%s1 + $0x10] sm:$0xff]
  %v40 = vld [vmem:[%s1 + $0x18] sm:$0xff]
  %v41 = vld [vmem:[%s1 + $0x20] sm:$0xff]
  %v42 = vld [vmem:[%s1 + $0x28] sm:$0xff]
  %v43 = vld [vmem:[%s1 + $0x30] sm:$0xff]
  %v44 = vld [vmem:[%s1 + $0x38] sm:$0xff]
  %v45 = vld [vmem:[%s1 + $0x40] sm:$0xff]
  %v46 = vld [vmem:[%s1 + $0x48] sm:$0xff]
  %v47 = vld [vmem:[%s1 + $0x50] sm:$0xff]
  %v48 = vld [vmem:[%s1 + $0x58] sm:$0xff]
  %v49 = vld [vmem:[%s1 + $0x60] sm:$0xff]
  %v50 = vld [vmem:[%s1 + $0x68] sm:$0xff]
  %v51 = vld [vmem:[%s1 + $0x70] sm:$0xff]
  %v52 = vld [vmem:[%s1 + $0x78] sm:$0xff]
  %v53 = vld [vmem:[%s1 + $0x80] sm:$0xff]
  %v54 = vld [vmem:[%s1 + $0x88] sm:$0xff]
  %v55 = vld [vmem:[%s1 + $0x90] sm:$0xff]
  %v56 = vld [vmem:[%s1 + $0x98] sm:$0xff]
  %v57 = vld [vmem:[%s1 + $0xa0] sm:$0xff]
  %v58 = vld [vmem:[%s1 + $0xa8] sm:$0xff]
  %v59 = vld [vmem:[%s1 + $0xb0] sm:$0xff]
  %v60 = vld [vmem:[%s1 + $0xb8] sm:$0xff]
  %v61 = vld [vmem:[%s1 + $0xc0] sm:$0xff]
  %v62 = vld [vmem:[%s1 + $0xc8] sm:$0xff]
  %v63 = vld [vmem:[%s1 + $0xd0] sm:$0xff]
  %v64 = vld [vmem:[%s1 + $0xd8] sm:$0xff]
  %v65 = vld [vmem:[%s1 + $0xe0] sm:$0xff]
  %v66 = vld [vmem:[%s1 + $0xe8] sm:$0xff]
  %v67 = vld [vmem:[%s1 + $0xf0] sm:$0xff]
  %v68 = vld [vmem:[%s1 + $0xf8] sm:$0xff]
  %v69 = vld [vmem:[%s1 + $0x100] sm:$0xff]
  %v70 = vld [vmem:[%s1 + $0x108] sm:$0xff]
  %v71 = vld [vmem:[%s1 + $0x110] sm:$0xff]
  %v72 = vld [vmem:[%s1 + $0x118] sm:$0xff]
  %v73 = vld [vmem:[%s1 + $0x120] sm:$0xff]
  %v74 = vld [vmem:[%s1 + $0x128] sm:$0xff]
  %v75 = vld [vmem:[%s1 + $0x130] sm:$0xff]
  %v76 = vld [vmem:[%s1 + $0x138] sm:$0xff]
  %v77 = vld [vmem:[%s1 + $0x140] sm:$0xff]
  %v78 = vld [vmem:[%s1 + $0x148] sm:$0xff]
  %v79 = vld [vmem:[%s1 + $0x150] sm:$0xff]
  %v80 = vld [vmem:[%s1 + $0x158] sm:$0xff]
  %v81 = vld [vmem:[%s1 + $0x160] sm:$0xff]
  %v82 = vld [vmem:[%s1 + $0x168] sm:$0xff]
  %v83 = vld [vmem:[%s1 + $0x170] sm:$0xff]
  %v84 = vld [vmem:[%s1 + $0x178] sm:$0xff]
  %v85 = vld [vmem:[%s2] sm:$0x7]
  %v87 = vlaneseq
  %v88 = vshrl.u32 %v87, 7
  %v89 = vsub.s32 0, %v88
  %v90 = vrot.slane %v85, %v89
  %v91 = vlaneseq
  %v92 = vshrl.u32 %v91, 7
  %v93 = vsub.s32 1, %v92
  %v94 = vrot.slane %v85, %v93
  %v95 = vlaneseq
  %v96 = vshrl.u32 %v95, 7
  %v97 = vsub.s32 2, %v96
  %v98 = vrot.slane %v85, %v97
  %102 = vmatprep.subr.mxu0 %v38
  %103 = vmatpush1.msra.mxu0 %v37
  %104 = vmatprep.subr.mxu0 %v41
  %105 = vmatpush1.msra.mxu0 %v40
  %106 = vmatprep.subr.mxu0 %v44
  %107 = vmatpush1.msra.mxu0 %v43
  %108 = vmatprep.subr.mxu0 %v47
  %109 = vmatpush1.msra.mxu0 %v46
  %110 = vmatprep.subr.mxu0 %v50
  %111 = vmatpush1.msra.mxu0 %v49
  %112 = vmatprep.subr.mxu0 %v53
  %113 = vmatpush1.msra.mxu0 %v52
  %114 = vmatprep.subr.mxu0 %v56
  %115 = vmatpush1.msra.mxu0 %v55
  %116 = vmatprep.subr.mxu0 %v59
  %117 = vmatpush1.msra.mxu0 %v58
  %118 = vmatprep.subr.mxu0 %v62
  %119 = vmatpush1.msra.mxu0 %v61
  %120 = vmatprep.subr.mxu0 %v65
  %121 = vmatpush1.msra.mxu0 %v64
  %122 = vmatprep.subr.mxu0 %v68
  %123 = vmatpush1.msra.mxu0 %v67
  %124 = vmatprep.subr.mxu0 %v71
  %125 = vmatpush1.msra.mxu0 %v70
  %126 = vmatprep.subr.mxu0 %v74
  %127 = vmatpush1.msra.mxu0 %v73
  %128 = vmatprep.subr.mxu0 %v77
  %129 = vmatpush1.msra.mxu0 %v76
  %130 = vmatprep.subr.mxu0 %v80
  %131 = vmatpush1.msra.mxu0 %v79
  %132 = vmatprep.subr.mxu0 %v83
  %133 = vmatpush1.msra.mxu0 %v82
  %134 = vmatprep.subr.mxu0 0.0
  %135 = vmatpush1.msra.mxu0 0.0
  %136 = vmatprep.subr.mxu0 0.0
  %137 = vmatpush1.msra.mxu0 0.0
  %138 = vmatprep.subr.mxu0 0.0
  %139 = vmatpush1.msra.mxu0 0.0
  %140 = vmatprep.subr.mxu0 0.0
  %141 = vmatpush1.msra.mxu0 0.0
  %142 = vmatprep.subr.mxu0 0.0
  %143 = vmatpush1.msra.mxu0 0.0
  %144 = vmatprep.subr.mxu0 0.0
  %145 = vmatpush1.msra.mxu0 0.0
  %146 = vmatprep.subr.mxu0 0.0
  %147 = vmatpush1.msra.mxu0 0.0
  %148 = vmatprep.subr.mxu0 0.0
  %149 = vmatpush1.msra.mxu0 0.0
  %150 = vmatprep.subr.mxu0 0.0
  %151 = vmatpush1.msra.mxu0 0.0
  %152 = vmatprep.subr.mxu0 0.0
  %153 = vmatpush1.msra.mxu0 0.0
  %154 = vmatprep.subr.mxu0 0.0
  %155 = vmatpush1.msra.mxu0 0.0
  %156 = vmatprep.subr.mxu0 0.0
  %157 = vmatpush1.msra.mxu0 0.0
  %158 = vmatprep.subr.mxu0 0.0
  %159 = vmatpush1.msra.mxu0 0.0
  %160 = vmatprep.subr.mxu0 0.0
  %161 = vmatpush1.msra.mxu0 0.0
  %162 = vmatprep.subr.mxu0 0.0
  %163 = vmatpush1.msra.mxu0 0.0
  %164 = vmatprep.subr.mxu0 0.0
  %165 = vmatpush1.msra.mxu0 0.0
  %166 = vmatprep.mubr.f32.mxu0 0.0
  %167 = vmatmul.mubr.f32.gmra.mrb[0].mxu0 %v33
  %v168 = vpop.f32.mrb[0].mxu0
  %v169 = vadd.f32 %v90, %v168
  %v170 = vpop.f32.mrb[0].mxu0
  %v171 = vadd.f32 %v94, %v170
  %172 = vmatprep.mubr.f32.mxu0 0.0
  %173 = vmatmul.mubr.f32.gmra.mrb[0].mxu0 %v34
  %v174 = vpop.f32.mrb[0].mxu0
  %v175 = vadd.f32 %v90, %v174
  %v176 = vpop.f32.mrb[0].mxu0
  %v177 = vadd.f32 %v94, %v176
  %178 = vmatprep.mubr.f32.mxu0 0.0
  %179 = vmatmul.mubr.f32.gmra.mrb[0].mxu0 %v35
  %v180 = vpop.f32.mrb[0].mxu0
  %v181 = vadd.f32 %v90, %v180
  %v182 = vpop.f32.mrb[0].mxu0
  %v183 = vadd.f32 %v94, %v182
  %184 = vmatprep.mubr.f32.mxu0 0.0
  %185 = vmatmul.mubr.f32.gmra.mrb[0].mxu0 %v36
  %v186 = vpop.f32.mrb[0].mxu0
  %v187 = vadd.f32 %v90, %v186
  %v188 = vpop.f32.mrb[0].mxu0
  %v189 = vadd.f32 %v94, %v188
  %190 = vdwg.mxu0
  %191 = vmatprep.subr.mxu0 0.0
  %192 = vmatpush1.msra.mxu0 %v39
  %193 = vmatprep.subr.mxu0 0.0
  %194 = vmatpush1.msra.mxu0 %v42
  %195 = vmatprep.subr.mxu0 0.0
  %196 = vmatpush1.msra.mxu0 %v45
  %197 = vmatprep.subr.mxu0 0.0
  %198 = vmatpush1.msra.mxu0 %v48
  %199 = vmatprep.subr.mxu0 0.0
  %200 = vmatpush1.msra.mxu0 %v51
  %201 = vmatprep.subr.mxu0 0.0
  %202 = vmatpush1.msra.mxu0 %v54
  %203 = vmatprep.subr.mxu0 0.0
  %204 = vmatpush1.msra.mxu0 %v57
  %205 = vmatprep.subr.mxu0 0.0
  %206 = vmatpush1.msra.mxu0 %v60
  %207 = vmatprep.subr.mxu0 0.0
  %208 = vmatpush1.msra.mxu0 %v63
  %209 = vmatprep.subr.mxu0 0.0
  %210 = vmatpush1.msra.mxu0 %v66
  %211 = vmatprep.subr.mxu0 0.0
  %212 = vmatpush1.msra.mxu0 %v69
  %213 = vmatprep.subr.mxu0 0.0
  %214 = vmatpush1.msra.mxu0 %v72
  %215 = vmatprep.subr.mxu0 0.0
  %216 = vmatpush1.msra.mxu0 %v75
  %217 = vmatprep.subr.mxu0 0.0
  %218 = vmatpush1.msra.mxu0 %v78
  %219 = vmatprep.subr.mxu0 0.0
  %220 = vmatpush1.msra.mxu0 %v81
  %221 = vmatprep.subr.mxu0 0.0
  %222 = vmatpush1.msra.mxu0 %v84
  %223 = vmatprep.subr.mxu0 0.0
  %224 = vmatpush1.msra.mxu0 0.0
  %225 = vmatprep.subr.mxu0 0.0
  %226 = vmatpush1.msra.mxu0 0.0
  %227 = vmatprep.subr.mxu0 0.0
  %228 = vmatpush1.msra.mxu0 0.0
  %229 = vmatprep.subr.mxu0 0.0
  %230 = vmatpush1.msra.mxu0 0.0
  %231 = vmatprep.subr.mxu0 0.0
  %232 = vmatpush1.msra.mxu0 0.0
  %233 = vmatprep.subr.mxu0 0.0
  %234 = vmatpush1.msra.mxu0 0.0
  %235 = vmatprep.subr.mxu0 0.0
  %236 = vmatpush1.msra.mxu0 0.0
  %237 = vmatprep.subr.mxu0 0.0
  %238 = vmatpush1.msra.mxu0 0.0
  %239 = vmatprep.subr.mxu0 0.0
  %240 = vmatpush1.msra.mxu0 0.0
  %241 = vmatprep.subr.mxu0 0.0
  %242 = vmatpush1.msra.mxu0 0.0
  %243 = vmatprep.subr.mxu0 0.0
  %244 = vmatpush1.msra.mxu0 0.0
  %245 = vmatprep.subr.mxu0 0.0
  %246 = vmatpush1.msra.mxu0 0.0
  %247 = vmatprep.subr.mxu0 0.0
  %248 = vmatpush1.msra.mxu0 0.0
  %249 = vmatprep.subr.mxu0 0.0
  %250 = vmatpush1.msra.mxu0 0.0
  %251 = vmatprep.subr.mxu0 0.0
  %252 = vmatpush1.msra.mxu0 0.0
  %253 = vmatprep.subr.mxu0 0.0
  %254 = vmatpush1.msra.mxu0 0.0
  %255 = vmatprep.mubr.f32.mxu0 0.0
  %256 = vmatmul.mubr.f32.gmra.mrb[0].mxu0 %v33
  %v257 = vpop.f32.mrb[0].mxu0
  %v258 = vadd.f32 %v98, %v257
  %v259 = vpop.f32.mrb[0].mxu0
  %260 = vmatprep.mubr.f32.mxu0 0.0
  %261 = vmatmul.mubr.f32.gmra.mrb[0].mxu0 %v34
  %v262 = vpop.f32.mrb[0].mxu0
  %v263 = vadd.f32 %v98, %v262
  %v264 = vpop.f32.mrb[0].mxu0
  %265 = vmatprep.mubr.f32.mxu0 0.0
  %266 = vmatmul.mubr.f32.gmra.mrb[0].mxu0 %v35
  %v267 = vpop.f32.mrb[0].mxu0
  %v268 = vadd.f32 %v98, %v267
  %v269 = vpop.f32.mrb[0].mxu0
  %270 = vmatprep.mubr.f32.mxu0 0.0
  %271 = vmatmul.mubr.f32.gmra.mrb[0].mxu0 %v36
  %v272 = vpop.f32.mrb[0].mxu0
  %v273 = vadd.f32 %v98, %v272
  %v274 = vpop.f32.mrb[0].mxu0
  %275 = vdwg.mxu0
  %v276 = vmax.f32 %v169, 0.0
  %v277 = vmax.f32 %v171, 0.0
  %v278 = vmax.f32 %v258, 0.0
  %v279 = vmax.f32 %v175, 0.0
  %v280 = vmax.f32 %v177, 0.0
  %v281 = vmax.f32 %v263, 0.0
  %v282 = vmax.f32 %v181, 0.0
  %v283 = vmax.f32 %v183, 0.0
  %v284 = vmax.f32 %v268, 0.0
  %v285 = vmax.f32 %v187, 0.0
  %v286 = vmax.f32 %v189, 0.0
  %v287 = vmax.f32 %v273, 0.0
  %v288 = vpack.c.bf16 %v279, %v276
  %v289 = vpack.c.bf16 %v280, %v277
  %v290 = vpack.c.bf16 %v281, %v278
  %v291 = vpack.c.bf16 %v285, %v282
  %v292 = vpack.c.bf16 %v286, %v283
  %v293 = vpack.c.bf16 %v287, %v284
  %v294 = vld [vmem:[%s3] sm:$0xf]
  %v295 = vld [vmem:[%s3 + $0x4] sm:$0xf]
  %v296 = vld [vmem:[%s3 + $0x8] sm:$0xf]
  %v297 = vld [vmem:[%s3 + $0xc] sm:$0xf]
  %v298 = vld [vmem:[%s3 + $0x10] sm:$0xf]
  %v299 = vld [vmem:[%s3 + $0x14] sm:$0xf]
  %v300 = vld [vmem:[%s3 + $0x18] sm:$0xf]
  %v301 = vld [vmem:[%s3 + $0x1c] sm:$0xf]
  %v302 = vld [vmem:[%s3 + $0x20] sm:$0xf]
  %v303 = vld [vmem:[%s3 + $0x24] sm:$0xf]
  %v304 = vld [vmem:[%s3 + $0x28] sm:$0xf]
  %v305 = vld [vmem:[%s3 + $0x2c] sm:$0xf]
  %v306 = vld [vmem:[%s3 + $0x30] sm:$0xf]
  %v307 = vld [vmem:[%s3 + $0x34] sm:$0xf]
  %v308 = vld [vmem:[%s3 + $0x38] sm:$0xf]
  %v309 = vld [vmem:[%s3 + $0x3c] sm:$0xf]
  %v310 = vld [vmem:[%s3 + $0x40] sm:$0xf]
  %v311 = vld [vmem:[%s3 + $0x44] sm:$0xf]
  %v312 = vld [vmem:[%s3 + $0x48] sm:$0xf]
  %v313 = vld [vmem:[%s3 + $0x4c] sm:$0xf]
  %v314 = vld [vmem:[%s3 + $0x50] sm:$0xf]
  %v315 = vld [vmem:[%s3 + $0x54] sm:$0xf]
  %v316 = vld [vmem:[%s3 + $0x58] sm:$0xf]
  %v317 = vld [vmem:[%s3 + $0x5c] sm:$0xf]
  %v318 = vld [vmem:[%s3 + $0x60] sm:$0xf]
  %v319 = vld [vmem:[%s3 + $0x64] sm:$0xf]
  %v320 = vld [vmem:[%s3 + $0x68] sm:$0xf]
  %v321 = vld [vmem:[%s3 + $0x6c] sm:$0xf]
  %v322 = vld [vmem:[%s3 + $0x70] sm:$0xf]
  %v323 = vld [vmem:[%s3 + $0x74] sm:$0xf]
  %v324 = vld [vmem:[%s3 + $0x78] sm:$0xf]
  %v325 = vld [vmem:[%s3 + $0x7c] sm:$0xf]
  %v326 = vld [vmem:[%s3 + $0x80] sm:$0xf]
  %v327 = vld [vmem:[%s3 + $0x84] sm:$0xf]
  %v328 = vld [vmem:[%s3 + $0x88] sm:$0xf]
  %v329 = vld [vmem:[%s3 + $0x8c] sm:$0xf]
  %v330 = vld [vmem:[%s4] sm:$0x1]
  %v332 = vlaneseq
  %v333 = vshrl.u32 %v332, 7
  %v334 = vsub.s32 0, %v333
  %v335 = vrot.slane %v330, %v334
  %v373 = vunpack.c.l.b16 %v294
  %v374 = vunpack.c.l.b16 %v295
  %v375 = vunpack.c.l.b16 %v296
  %v376 = vunpack.c.l.b16 %v297
  %v377 = vunpack.c.l.b16 %v298
  %v378 = vunpack.c.l.b16 %v299
  %v379 = vunpack.c.l.b16 %v300
  %v380 = vunpack.c.l.b16 %v301
  %v381 = vunpack.c.l.b16 %v302
  %v382 = vunpack.c.l.b16 %v303
  %v383 = vunpack.c.l.b16 %v304
  %v384 = vunpack.c.l.b16 %v305
  %v385 = vunpack.c.l.b16 %v306
  %v386 = vunpack.c.l.b16 %v307
  %v387 = vunpack.c.l.b16 %v308
  %v388 = vunpack.c.l.b16 %v309
  %v389 = vunpack.c.l.b16 %v310
  %v390 = vunpack.c.l.b16 %v311
  %v391 = vunpack.c.l.b16 %v312
  %v392 = vunpack.c.l.b16 %v313
  %v393 = vunpack.c.l.b16 %v314
  %v394 = vunpack.c.l.b16 %v315
  %v395 = vunpack.c.l.b16 %v316
  %v396 = vunpack.c.l.b16 %v317
  %v397 = vunpack.c.l.b16 %v318
  %v398 = vunpack.c.l.b16 %v319
  %v399 = vunpack.c.l.b16 %v320
  %v400 = vunpack.c.l.b16 %v321
  %v401 = vunpack.c.l.b16 %v322
  %v402 = vunpack.c.l.b16 %v323
  %v403 = vunpack.c.l.b16 %v324
  %v404 = vunpack.c.l.b16 %v325
  %v405 = vunpack.c.l.b16 %v326
  %v406 = vunpack.c.l.b16 %v327
  %v407 = vunpack.c.l.b16 %v328
  %v408 = vunpack.c.l.b16 %v329
  %v409 = vpack.c.b16 %v374, %v373
  %v410 = vpack.c.b16 %v376, %v375
  %v411 = vpack.c.b16 %v378, %v377
  %v412 = vpack.c.b16 %v380, %v379
  %v413 = vpack.c.b16 %v382, %v381
  %v414 = vpack.c.b16 %v384, %v383
  %v415 = vpack.c.b16 %v386, %v385
  %v416 = vpack.c.b16 %v388, %v387
  %v417 = vpack.c.b16 %v390, %v389
  %v418 = vpack.c.b16 %v392, %v391
  %v419 = vpack.c.b16 %v394, %v393
  %v420 = vpack.c.b16 %v396, %v395
  %v421 = vpack.c.b16 %v398, %v397
  %v422 = vpack.c.b16 %v400, %v399
  %v423 = vpack.c.b16 %v402, %v401
  %v424 = vpack.c.b16 %v404, %v403
  %v425 = vpack.c.b16 %v406, %v405
  %v426 = vpack.c.b16 %v408, %v407
  %vm445 = vcmask 261120
  %v447 = vsel %vm445, %v290, 0
  %v450 = vsel %vm445, %v293, 0
  %452 = vmatprep.subr.bf16.mxu0 0
  %453 = vmatpush1.bf16.msra.mxu0 %v409
  %454 = vmatprep.subr.bf16.mxu0 0
  %455 = vmatpush1.bf16.msra.mxu0 %v410
  %456 = vmatprep.subr.bf16.mxu0 0
  %457 = vmatpush1.bf16.msra.mxu0 %v411
  %458 = vmatprep.subr.bf16.mxu0 0
  %459 = vmatpush1.bf16.msra.mxu0 %v412
  %460 = vmatprep.subr.bf16.mxu0 0
  %461 = vmatpush1.bf16.msra.mxu0 %v413
  %462 = vmatprep.subr.bf16.mxu0 0
  %463 = vmatpush1.bf16.msra.mxu0 %v414
  %464 = vmatprep.subr.bf16.mxu0 0
  %465 = vmatpush1.bf16.msra.mxu0 %v415
  %466 = vmatprep.subr.bf16.mxu0 0
  %467 = vmatpush1.bf16.msra.mxu0 %v416
  %468 = vmatprep.subr.bf16.mxu0 0
  %469 = vmatpush1.bf16.msra.mxu0 %v417
  %470 = vmatprep.subr.bf16.mxu0 0
  %471 = vmatpush1.bf16.msra.mxu0 %v418
  %472 = vmatprep.subr.bf16.mxu0 0
  %473 = vmatpush1.bf16.msra.mxu0 %v419
  %474 = vmatprep.subr.bf16.mxu0 0
  %475 = vmatpush1.bf16.msra.mxu0 %v420
  %476 = vmatprep.subr.bf16.mxu0 0
  %477 = vmatpush1.bf16.msra.mxu0 %v421
  %478 = vmatprep.subr.bf16.mxu0 0
  %479 = vmatpush1.bf16.msra.mxu0 %v422
  %480 = vmatprep.subr.bf16.mxu0 0
  %481 = vmatpush1.bf16.msra.mxu0 %v423
  %482 = vmatprep.subr.bf16.mxu0 0
  %483 = vmatpush1.bf16.msra.mxu0 %v424
  %484 = vmatprep.mubr.bf16.mxu0 %v289
  %485 = vmatmul.mubr.bf16.gmra.mrb[0].mxu0 %v288
  %v486 = vpop.f32.mrb[0].mxu0
  %v487 = vadd.f32 %v335, %v486
  %v488 = vpop.f32.mrb[0].mxu0
  %v489 = vpop.f32.mrb[0].mxu0
  %v490 = vadd.f32 %v335, %v489
  %v491 = vpop.f32.mrb[0].mxu0
  %492 = vmatprep.mubr.bf16.mxu0 %v292
  %493 = vmatmul.mubr.bf16.gmra.mrb[0].mxu0 %v291
  %v494 = vpop.f32.mrb[0].mxu0
  %v495 = vadd.f32 %v335, %v494
  %v496 = vpop.f32.mrb[0].mxu0
  %v497 = vpop.f32.mrb[0].mxu0
  %v498 = vadd.f32 %v335, %v497
  %v499 = vpop.f32.mrb[0].mxu0
  %500 = vdwg.mxu0
  %501 = vmatprep.subr.bf16.mxu0 0
  %502 = vmatpush1.bf16.msra.mxu0 %v425
  %503 = vmatprep.subr.bf16.mxu0 0
  %504 = vmatpush1.bf16.msra.mxu0 %v426
  %505 = vmatprep.subr.bf16.mxu0 0
  %506 = vmatpush1.bf16.msra.mxu0 0
  %507 = vmatprep.subr.bf16.mxu0 0
  %508 = vmatpush1.bf16.msra.mxu0 0
  %509 = vmatprep.subr.bf16.mxu0 0
  %510 = vmatpush1.bf16.msra.mxu0 0
  %511 = vmatprep.subr.bf16.mxu0 0
  %512 = vmatpush1.bf16.msra.mxu0 0
  %513 = vmatprep.subr.bf16.mxu0 0
  %514 = vmatpush1.bf16.msra.mxu0 0
  %515 = vmatprep.subr.bf16.mxu0 0
  %516 = vmatpush1.bf16.msra.mxu0 0
  %517 = vmatprep.subr.bf16.mxu0 0
  %518 = vmatpush1.bf16.msra.mxu0 0
  %519 = vmatprep.subr.bf16.mxu0 0
  %520 = vmatpush1.bf16.msra.mxu0 0
  %521 = vmatprep.subr.bf16.mxu0 0
  %522 = vmatpush1.bf16.msra.mxu0 0
  %523 = vmatprep.subr.bf16.mxu0 0
  %524 = vmatpush1.bf16.msra.mxu0 0
  %525 = vmatprep.subr.bf16.mxu0 0
  %526 = vmatpush1.bf16.msra.mxu0 0
  %527 = vmatprep.subr.bf16.mxu0 0
  %528 = vmatpush1.bf16.msra.mxu0 0
  %529 = vmatprep.subr.bf16.mxu0 0
  %530 = vmatpush1.bf16.msra.mxu0 0
  %531 = vmatprep.subr.bf16.mxu0 0
  %532 = vmatpush1.bf16.msra.mxu0 0
  %533 = vmatprep.mubr.bf16.mxu0 0
  %534 = vmatmul.mubr.bf16.gmra.mrb[0].mxu0 %v447
  %v535 = vpop.f32.mrb[0].mxu0
  %v536 = vadd.f32 %v487, %v535
  %v537 = vpop.f32.mrb[0].mxu0
  %v538 = vpop.f32.mrb[0].mxu0
  %v539 = vadd.f32 %v490, %v538
  %v540 = vpop.f32.mrb[0].mxu0
  %541 = vmatprep.mubr.bf16.mxu0 0
  %542 = vmatmul.mubr.bf16.gmra.mrb[0].mxu0 %v450
  %v543 = vpop.f32.mrb[0].mxu0
  %v544 = vadd.f32 %v495, %v543
  %v545 = vpop.f32.mrb[0].mxu0
  %v546 = vpop.f32.mrb[0].mxu0
  %v547 = vadd.f32 %v498, %v546
  %v548 = vpop.f32.mrb[0].mxu0
  %549 = vdwg.mxu0
  %v550 = vmax.f32 %v536, 0.0
  %v551 = vmax.f32 %v539, 0.0
  %v552 = vmax.f32 %v544, 0.0
  %v553 = vmax.f32 %v547, 0.0
  %v554 = vpack.c.bf16 %v550, %v550
  %v555 = vpack.c.bf16 %v551, %v551
  %v556 = vpack.c.bf16 %v552, %v552
  %v557 = vpack.c.bf16 %v553, %v553
  %v558 = vld [vmem:[%s5] sm:$0xf]
  %v559 = vld [vmem:[%s5 + $0x4] sm:$0xf]
  %v560 = vld [vmem:[%s5 + $0x8] sm:$0xf]
  %v561 = vld [vmem:[%s5 + $0xc] sm:$0xf]
  %v562 = vld [vmem:[%s5 + $0x10] sm:$0xf]
  %v563 = vld [vmem:[%s5 + $0x14] sm:$0xf]
  %v564 = vld [vmem:[%s5 + $0x18] sm:$0xf]
  %v565 = vld [vmem:[%s5 + $0x1c] sm:$0xf]
  %v566 = vld [vmem:[%s5 + $0x20] sm:$0xf]
  %v567 = vld [vmem:[%s5 + $0x24] sm:$0xf]
  %v568 = vld [vmem:[%s5 + $0x28] sm:$0xf]
  %v569 = vld [vmem:[%s5 + $0x2c] sm:$0xf]
  %v570 = vld [vmem:[%s5 + $0x30] sm:$0xf]
  %v571 = vld [vmem:[%s5 + $0x34] sm:$0xf]
  %v572 = vld [vmem:[%s5 + $0x38] sm:$0xf]
  %v573 = vld [vmem:[%s5 + $0x3c] sm:$0xf]
  %v574 = vld [vmem:[%s5 + $0x40] sm:$0xf]
  %v575 = vld [vmem:[%s5 + $0x44] sm:$0xf]
  %v576 = vld [vmem:[%s5 + $0x48] sm:$0xf]
  %v577 = vld [vmem:[%s5 + $0x4c] sm:$0xf]
  %v578 = vld [vmem:[%s5 + $0x50] sm:$0xf]
  %v579 = vld [vmem:[%s5 + $0x54] sm:$0xf]
  %v580 = vld [vmem:[%s5 + $0x58] sm:$0xf]
  %v581 = vld [vmem:[%s5 + $0x5c] sm:$0xf]
  %v582 = vld [vmem:[%s5 + $0x60] sm:$0xf]
  %v583 = vld [vmem:[%s5 + $0x64] sm:$0xf]
  %v584 = vld [vmem:[%s5 + $0x68] sm:$0xf]
  %v585 = vld [vmem:[%s5 + $0x6c] sm:$0xf]
  %v586 = vld [vmem:[%s5 + $0x70] sm:$0xf]
  %v587 = vld [vmem:[%s5 + $0x74] sm:$0xf]
  %v588 = vld [vmem:[%s5 + $0x78] sm:$0xf]
  %v589 = vld [vmem:[%s5 + $0x7c] sm:$0xf]
  %v590 = vld [vmem:[%s5 + $0x80] sm:$0xf]
  %v591 = vld [vmem:[%s5 + $0x84] sm:$0xf]
  %v592 = vld [vmem:[%s5 + $0x88] sm:$0xf]
  %v593 = vld [vmem:[%s5 + $0x8c] sm:$0xf]
  %v594 = vld [vmem:[%s5 + $0x90] sm:$0xf]
  %v595 = vld [vmem:[%s5 + $0x94] sm:$0xf]
  %v596 = vld [vmem:[%s5 + $0x98] sm:$0xf]
  %v597 = vld [vmem:[%s5 + $0x9c] sm:$0xf]
  %v598 = vld [vmem:[%s5 + $0xa0] sm:$0xf]
  %v599 = vld [vmem:[%s5 + $0xa4] sm:$0xf]
  %v600 = vld [vmem:[%s5 + $0xa8] sm:$0xf]
  %v601 = vld [vmem:[%s5 + $0xac] sm:$0xf]
  %v602 = vld [vmem:[%s5 + $0xb0] sm:$0xf]
  %v603 = vld [vmem:[%s5 + $0xb4] sm:$0xf]
  %v604 = vld [vmem:[%s5 + $0xb8] sm:$0xf]
  %v605 = vld [vmem:[%s5 + $0xbc] sm:$0xf]
  %v606 = vld [vmem:[%s5 + $0xc0] sm:$0xf]
  %v607 = vld [vmem:[%s5 + $0xc4] sm:$0xf]
  %v608 = vld [vmem:[%s5 + $0xc8] sm:$0xf]
  %v609 = vld [vmem:[%s5 + $0xcc] sm:$0xf]
  %v610 = vld [vmem:[%s5 + $0xd0] sm:$0xf]
  %v611 = vld [vmem:[%s5 + $0xd4] sm:$0xf]
  %v612 = vld [vmem:[%s5 + $0xd8] sm:$0xf]
  %v613 = vld [vmem:[%s5 + $0xdc] sm:$0xf]
  %v614 = vld [vmem:[%s5 + $0xe0] sm:$0xf]
  %v615 = vld [vmem:[%s5 + $0xe4] sm:$0xf]
  %v616 = vld [vmem:[%s5 + $0xe8] sm:$0xf]
  %v617 = vld [vmem:[%s5 + $0xec] sm:$0xf]
  %v618 = vld [vmem:[%s5 + $0xf0] sm:$0xf]
  %v619 = vld [vmem:[%s5 + $0xf4] sm:$0xf]
  %v620 = vld [vmem:[%s5 + $0xf8] sm:$0xf]
  %v621 = vld [vmem:[%s5 + $0xfc] sm:$0xf]
  %v622 = vld [vmem:[%s6] sm:$0x1]
  %v624 = vlaneseq
  %v625 = vshrl.u32 %v624, 7
  %v626 = vsub.s32 0, %v625
  %v627 = vrot.slane %v622, %v626
  %v693 = vunpack.c.l.b16 %v558
  %v694 = vunpack.c.l.b16 %v559
  %v695 = vunpack.c.l.b16 %v560
  %v696 = vunpack.c.l.b16 %v561
  %v697 = vunpack.c.l.b16 %v562
  %v698 = vunpack.c.l.b16 %v563
  %v699 = vunpack.c.l.b16 %v564
  %v700 = vunpack.c.l.b16 %v565
  %v701 = vunpack.c.l.b16 %v566
  %v702 = vunpack.c.l.b16 %v567
  %v703 = vunpack.c.l.b16 %v568
  %v704 = vunpack.c.l.b16 %v569
  %v705 = vunpack.c.l.b16 %v570
  %v706 = vunpack.c.l.b16 %v571
  %v707 = vunpack.c.l.b16 %v572
  %v708 = vunpack.c.l.b16 %v573
  %v709 = vunpack.c.l.b16 %v574
  %v710 = vunpack.c.l.b16 %v575
  %v711 = vunpack.c.l.b16 %v576
  %v712 = vunpack.c.l.b16 %v577
  %v713 = vunpack.c.l.b16 %v578
  %v714 = vunpack.c.l.b16 %v579
  %v715 = vunpack.c.l.b16 %v580
  %v716 = vunpack.c.l.b16 %v581
  %v717 = vunpack.c.l.b16 %v582
  %v718 = vunpack.c.l.b16 %v583
  %v719 = vunpack.c.l.b16 %v584
  %v720 = vunpack.c.l.b16 %v585
  %v721 = vunpack.c.l.b16 %v586
  %v722 = vunpack.c.l.b16 %v587
  %v723 = vunpack.c.l.b16 %v588
  %v724 = vunpack.c.l.b16 %v589
  %v725 = vunpack.c.l.b16 %v590
  %v726 = vunpack.c.l.b16 %v591
  %v727 = vunpack.c.l.b16 %v592
  %v728 = vunpack.c.l.b16 %v593
  %v729 = vunpack.c.l.b16 %v594
  %v730 = vunpack.c.l.b16 %v595
  %v731 = vunpack.c.l.b16 %v596
  %v732 = vunpack.c.l.b16 %v597
  %v733 = vunpack.c.l.b16 %v598
  %v734 = vunpack.c.l.b16 %v599
  %v735 = vunpack.c.l.b16 %v600
  %v736 = vunpack.c.l.b16 %v601
  %v737 = vunpack.c.l.b16 %v602
  %v738 = vunpack.c.l.b16 %v603
  %v739 = vunpack.c.l.b16 %v604
  %v740 = vunpack.c.l.b16 %v605
  %v741 = vunpack.c.l.b16 %v606
  %v742 = vunpack.c.l.b16 %v607
  %v743 = vunpack.c.l.b16 %v608
  %v744 = vunpack.c.l.b16 %v609
  %v745 = vunpack.c.l.b16 %v610
  %v746 = vunpack.c.l.b16 %v611
  %v747 = vunpack.c.l.b16 %v612
  %v748 = vunpack.c.l.b16 %v613
  %v749 = vunpack.c.l.b16 %v614
  %v750 = vunpack.c.l.b16 %v615
  %v751 = vunpack.c.l.b16 %v616
  %v752 = vunpack.c.l.b16 %v617
  %v753 = vunpack.c.l.b16 %v618
  %v754 = vunpack.c.l.b16 %v619
  %v755 = vunpack.c.l.b16 %v620
  %v756 = vunpack.c.l.b16 %v621
  %v757 = vpack.c.b16 %v694, %v693
  %v758 = vpack.c.b16 %v696, %v695
  %v759 = vpack.c.b16 %v698, %v697
  %v760 = vpack.c.b16 %v700, %v699
  %v761 = vpack.c.b16 %v702, %v701
  %v762 = vpack.c.b16 %v704, %v703
  %v763 = vpack.c.b16 %v706, %v705
  %v764 = vpack.c.b16 %v708, %v707
  %v765 = vpack.c.b16 %v710, %v709
  %v766 = vpack.c.b16 %v712, %v711
  %v767 = vpack.c.b16 %v714, %v713
  %v768 = vpack.c.b16 %v716, %v715
  %v769 = vpack.c.b16 %v718, %v717
  %v770 = vpack.c.b16 %v720, %v719
  %v771 = vpack.c.b16 %v722, %v721
  %v772 = vpack.c.b16 %v724, %v723
  %v773 = vpack.c.b16 %v726, %v725
  %v774 = vpack.c.b16 %v728, %v727
  %v775 = vpack.c.b16 %v730, %v729
  %v776 = vpack.c.b16 %v732, %v731
  %v777 = vpack.c.b16 %v734, %v733
  %v778 = vpack.c.b16 %v736, %v735
  %v779 = vpack.c.b16 %v738, %v737
  %v780 = vpack.c.b16 %v740, %v739
  %v781 = vpack.c.b16 %v742, %v741
  %v782 = vpack.c.b16 %v744, %v743
  %v783 = vpack.c.b16 %v746, %v745
  %v784 = vpack.c.b16 %v748, %v747
  %v785 = vpack.c.b16 %v750, %v749
  %v786 = vpack.c.b16 %v752, %v751
  %v787 = vpack.c.b16 %v754, %v753
  %v788 = vpack.c.b16 %v756, %v755
  %821 = vmatprep.subr.bf16.mxu0 0
  %822 = vmatpush1.bf16.msra.mxu0 %v757
  %823 = vmatprep.subr.bf16.mxu0 0
  %824 = vmatpush1.bf16.msra.mxu0 %v758
  %825 = vmatprep.subr.bf16.mxu0 0
  %826 = vmatpush1.bf16.msra.mxu0 %v759
  %827 = vmatprep.subr.bf16.mxu0 0
  %828 = vmatpush1.bf16.msra.mxu0 %v760
  %829 = vmatprep.subr.bf16.mxu0 0
  %830 = vmatpush1.bf16.msra.mxu0 %v761
  %831 = vmatprep.subr.bf16.mxu0 0
  %832 = vmatpush1.bf16.msra.mxu0 %v762
  %833 = vmatprep.subr.bf16.mxu0 0
  %834 = vmatpush1.bf16.msra.mxu0 %v763
  %835 = vmatprep.subr.bf16.mxu0 0
  %836 = vmatpush1.bf16.msra.mxu0 %v764
  %837 = vmatprep.subr.bf16.mxu0 0
  %838 = vmatpush1.bf16.msra.mxu0 %v765
  %839 = vmatprep.subr.bf16.mxu0 0
  %840 = vmatpush1.bf16.msra.mxu0 %v766
  %841 = vmatprep.subr.bf16.mxu0 0
  %842 = vmatpush1.bf16.msra.mxu0 %v767
  %843 = vmatprep.subr.bf16.mxu0 0
  %844 = vmatpush1.bf16.msra.mxu0 %v768
  %845 = vmatprep.subr.bf16.mxu0 0
  %846 = vmatpush1.bf16.msra.mxu0 %v769
  %847 = vmatprep.subr.bf16.mxu0 0
  %848 = vmatpush1.bf16.msra.mxu0 %v770
  %849 = vmatprep.subr.bf16.mxu0 0
  %850 = vmatpush1.bf16.msra.mxu0 %v771
  %851 = vmatprep.subr.bf16.mxu0 0
  %852 = vmatpush1.bf16.msra.mxu0 %v772
  %853 = vmatprep.mubr.bf16.mxu0 %v555
  %854 = vmatmul.mubr.bf16.gmra.mrb[0].mxu0 %v554
  %v855 = vpop.f32.mrb[0].mxu0
  %v856 = vadd.f32 %v627, %v855
  %v857 = vpop.f32.mrb[0].mxu0
  %v858 = vpop.f32.mrb[0].mxu0
  %v859 = vpop.f32.mrb[0].mxu0
  %860 = vdwg.mxu0
  %861 = vmatprep.subr.bf16.mxu0 0
  %862 = vmatpush1.bf16.msra.mxu0 %v773
  %863 = vmatprep.subr.bf16.mxu0 0
  %864 = vmatpush1.bf16.msra.mxu0 %v774
  %865 = vmatprep.subr.bf16.mxu0 0
  %866 = vmatpush1.bf16.msra.mxu0 %v775
  %867 = vmatprep.subr.bf16.mxu0 0
  %868 = vmatpush1.bf16.msra.mxu0 %v776
  %869 = vmatprep.subr.bf16.mxu0 0
  %870 = vmatpush1.bf16.msra.mxu0 %v777
  %871 = vmatprep.subr.bf16.mxu0 0
  %872 = vmatpush1.bf16.msra.mxu0 %v778
  %873 = vmatprep.subr.bf16.mxu0 0
  %874 = vmatpush1.bf16.msra.mxu0 %v779
  %875 = vmatprep.subr.bf16.mxu0 0
  %876 = vmatpush1.bf16.msra.mxu0 %v780
  %877 = vmatprep.subr.bf16.mxu0 0
  %878 = vmatpush1.bf16.msra.mxu0 %v781
  %879 = vmatprep.subr.bf16.mxu0 0
  %880 = vmatpush1.bf16.msra.mxu0 %v782
  %881 = vmatprep.subr.bf16.mxu0 0
  %882 = vmatpush1.bf16.msra.mxu0 %v783
  %883 = vmatprep.subr.bf16.mxu0 0
  %884 = vmatpush1.bf16.msra.mxu0 %v784
  %885 = vmatprep.subr.bf16.mxu0 0
  %886 = vmatpush1.bf16.msra.mxu0 %v785
  %887 = vmatprep.subr.bf16.mxu0 0
  %888 = vmatpush1.bf16.msra.mxu0 %v786
  %889 = vmatprep.subr.bf16.mxu0 0
  %890 = vmatpush1.bf16.msra.mxu0 %v787
  %891 = vmatprep.subr.bf16.mxu0 0
  %892 = vmatpush1.bf16.msra.mxu0 %v788
  %893 = vmatprep.mubr.bf16.mxu0 %v557
  %894 = vmatmul.mubr.bf16.gmra.mrb[0].mxu0 %v556
  %v895 = vpop.f32.mrb[0].mxu0
  %v896 = vadd.f32 %v856, %v895
  %v897 = vpop.f32.mrb[0].mxu0
  %v898 = vpop.f32.mrb[0].mxu0
  %v899 = vpop.f32.mrb[0].mxu0
  %900 = vdwg.mxu0
  %v901 = vmax.f32 %v896, 0.0
  %v902 = vpack.c.bf16 %v901, %v901
  %v903 = vld [vmem:[%s7] sm:$0xf]
  %v904 = vld [vmem:[%s7 + $0x4] sm:$0xf]
  %v905 = vld [vmem:[%s7 + $0x8] sm:$0xf]
  %v906 = vld [vmem:[%s7 + $0xc] sm:$0xf]
  %v907 = vld [vmem:[%s7 + $0x10] sm:$0xf]
  %v908 = vld [vmem:[%s7 + $0x14] sm:$0xf]
  %v909 = vld [vmem:[%s7 + $0x18] sm:$0xf]
  %v910 = vld [vmem:[%s7 + $0x1c] sm:$0xf]
  %v911 = vld [vmem:[%s7 + $0x20] sm:$0xf]
  %v912 = vld [vmem:[%s7 + $0x24] sm:$0xf]
  %v913 = vld [vmem:[%s7 + $0x28] sm:$0xf]
  %v914 = vld [vmem:[%s7 + $0x2c] sm:$0xf]
  %v915 = vld [vmem:[%s7 + $0x30] sm:$0xf]
  %v916 = vld [vmem:[%s7 + $0x34] sm:$0xf]
  %v917 = vld [vmem:[%s7 + $0x38] sm:$0xf]
  %v918 = vld [vmem:[%s7 + $0x3c] sm:$0xf]
  %v919 = vld [vmem:[%s8] sm:$0x1]
  %v921 = vlaneseq
  %v922 = vshrl.u32 %v921, 7
  %v923 = vsub.s32 0, %v922
  %v924 = vrot.slane %v919, %v923
  %v942 = vunpack.c.l.b16 %v903
  %v943 = vunpack.c.l.b16 %v904
  %v944 = vunpack.c.l.b16 %v905
  %v945 = vunpack.c.l.b16 %v906
  %v946 = vunpack.c.l.b16 %v907
  %v947 = vunpack.c.l.b16 %v908
  %v948 = vunpack.c.l.b16 %v909
  %v949 = vunpack.c.l.b16 %v910
  %v950 = vunpack.c.l.b16 %v911
  %v951 = vunpack.c.l.b16 %v912
  %v952 = vunpack.c.l.b16 %v913
  %v953 = vunpack.c.l.b16 %v914
  %v954 = vunpack.c.l.b16 %v915
  %v955 = vunpack.c.l.b16 %v916
  %v956 = vunpack.c.l.b16 %v917
  %v957 = vunpack.c.l.b16 %v918
  %v958 = vpack.c.b16 %v943, %v942
  %v959 = vpack.c.b16 %v945, %v944
  %v960 = vpack.c.b16 %v947, %v946
  %v961 = vpack.c.b16 %v949, %v948
  %v962 = vpack.c.b16 %v951, %v950
  %v963 = vpack.c.b16 %v953, %v952
  %v964 = vpack.c.b16 %v955, %v954
  %v965 = vpack.c.b16 %v957, %v956
  %974 = vmatprep.subr.bf16.mxu0 0
  %975 = vmatpush1.bf16.msra.mxu0 %v958
  %976 = vmatprep.subr.bf16.mxu0 0
  %977 = vmatpush1.bf16.msra.mxu0 %v959
  %978 = vmatprep.subr.bf16.mxu0 0
  %979 = vmatpush1.bf16.msra.mxu0 %v960
  %980 = vmatprep.subr.bf16.mxu0 0
  %981 = vmatpush1.bf16.msra.mxu0 %v961
  %982 = vmatprep.subr.bf16.mxu0 0
  %983 = vmatpush1.bf16.msra.mxu0 %v962
  %984 = vmatprep.subr.bf16.mxu0 0
  %985 = vmatpush1.bf16.msra.mxu0 %v963
  %986 = vmatprep.subr.bf16.mxu0 0
  %987 = vmatpush1.bf16.msra.mxu0 %v964
  %988 = vmatprep.subr.bf16.mxu0 0
  %989 = vmatpush1.bf16.msra.mxu0 %v965
  %990 = vmatprep.subr.bf16.mxu0 0
  %991 = vmatpush1.bf16.msra.mxu0 0
  %992 = vmatprep.subr.bf16.mxu0 0
  %993 = vmatpush1.bf16.msra.mxu0 0
  %994 = vmatprep.subr.bf16.mxu0 0
  %995 = vmatpush1.bf16.msra.mxu0 0
  %996 = vmatprep.subr.bf16.mxu0 0
  %997 = vmatpush1.bf16.msra.mxu0 0
  %998 = vmatprep.subr.bf16.mxu0 0
  %999 = vmatpush1.bf16.msra.mxu0 0
  %1000 = vmatprep.subr.bf16.mxu0 0
  %1001 = vmatpush1.bf16.msra.mxu0 0
  %1002 = vmatprep.subr.bf16.mxu0 0
  %1003 = vmatpush1.bf16.msra.mxu0 0
  %1004 = vmatprep.subr.bf16.mxu0 0
  %1005 = vmatpush1.bf16.msra.mxu0 0
  %1006 = vmatprep.mubr.bf16.mxu0 0
  %1007 = vmatmul.mubr.bf16.gmra.mrb[0].mxu0 %v902
  %v1008 = vpop.f32.mrb[0].mxu0
  %v1009 = vadd.f32 %v924, %v1008
  %v1010 = vpop.f32.mrb[0].mxu0
  %v1011 = vpop.f32.mrb[0].mxu0
  %v1012 = vpop.f32.mrb[0].mxu0
  %1013 = vdwg.mxu0
  %1014 = vst [vmem:[%s9] sm:$0xff] %v1009
  // Predicated region
  $region38: #{convnet_forward.1} parent=0 // pred_check
    _
  $region39: #{convnet_forward.1} parent=0 // pred_check_branch
    %1016 = sbr.rel (0) target = $region41
  $region40: #{convnet_forward.1} parent=0 // pred_region
    _
  $region41: #{convnet_forward.1} parent=0 // pred_fallthru
    _
  // Predicated region
  $region42: #{convnet_forward.1} parent=0 // pred_check
    _
  $region43: #{convnet_forward.1} parent=0 // pred_check_branch
    %1018 = sbr.rel (0) target = $region45
  $region44: #{convnet_forward.1} parent=0 // pred_region
    _
  $region45: #{convnet_forward.1} parent=0 // pred_fallthru
    _

</llo_original>
